<compile_context>
chip_gen: v7x
topology: tpu7x:2x2x1
jax: 0.10.0
libtpu: 0.0.40
codegen_flags: <defaults>
</compile_context>

<pallas_src>
import jax
import jax.numpy as jnp
from jax import lax
from jax.experimental import pallas as pl
from jax.experimental.pallas import tpu as pltpu

C = 5    # number of part tokens (fixed by the module)
WP = 8   # sublane-padded number of rollout rows carried in-kernel (>= C)


def _part_cam_kernel(att_ref, feat_ref, out_ref, w_ref):
    """Grid = (batch, layer).  Layer axis runs k = 0..L-1 over layers L-1..0.

    att_ref : [N, N]   attention of layer (L-1-k) for the current batch
    feat_ref: [N, D]   token features for the current batch
    out_ref : [WP, D]  row r = CAM feature of part r (rows C..WP-1 are junk)
    w_ref   : [WP, N]  f32 scratch carrying the rollout rows across layers
    """
    k = pl.program_id(1)
    last = pl.num_programs(1) - 1
    N = att_ref.shape[-1]

    # Column mask implementing the restriction to S_e = {e} U {C..N-1}:
    # keep[r, j] = (j >= C) or (j == r).  Re-masking after every right-multiply
    # is equivalent to working with the restricted [M, M] sub-matrix.
    col = lax.broadcasted_iota(jnp.int32, (WP, N), 1)
    row = lax.broadcasted_iota(jnp.int32, (WP, N), 0)
    keep = jnp.logical_or(col >= C, col == row).astype(jnp.float32)   # [WP, N]

    @pl.when(k == 0)
    def _():
        # Init with rows 0..WP-1 of the LAST layer's attention, restricted.
        w_ref[...] = att_ref[0:WP, :].astype(jnp.float32) * keep

    @pl.when(k > 0)
    def _():
        # Rollout step: r <- r @ att[l], re-restricted to S_e columns.
        a = att_ref[...].astype(jnp.float32)                          # [N, N]
        w_ref[...] = jnp.dot(w_ref[...], a,
                             preferred_element_type=jnp.float32) * keep

    @pl.when(k == last)
    def _():
        # Keep only patch columns (drops the part-e self entry = "row 0, col 0"
        # of the restricted product), then project onto relu(features).
        # Rows < C of the features meet zero columns of w, so no explicit
        # feature-row masking is needed.
        w = w_ref[...] * (col >= C).astype(jnp.float32)               # [WP, N]
        fm = jnp.maximum(feat_ref[...].astype(jnp.float32), 0.0)      # [N, D]
        out_ref[...] = jnp.dot(w, fm,
                               preferred_element_type=jnp.float32
                               ).astype(out_ref.dtype)


def part_cam_pallas(xs, features, *, compute_dtype=None):
    """xs: list of L arrays [b, N, N]; features: [b, N, D] -> [b, C-1, D].

    compute_dtype=jnp.bfloat16 halves HBM traffic on the attention stream
    (f32 MXU accumulation is kept); default keeps the input dtype.
    """
    L = len(xs)
    b, N, _ = xs[0].shape
    D = features.shape[-1]
    assert N >= WP, "need at least 8 tokens for the sublane-padded rollout"

    dt = compute_dtype if compute_dtype is not None else xs[0].dtype
    att_all = jnp.stack(xs, axis=1).astype(dt)      # [b, L, N, N]
    feats = features.astype(dt)                     # [b, N, D]

    out = pl.pallas_call(
        _part_cam_kernel,
        out_shape=jax.ShapeDtypeStruct((b, WP, D), jnp.float32),
        grid_spec=pltpu.PrefetchScalarGridSpec(
            num_scalar_prefetch=0,
            grid=(b, L),
            in_specs=[
                # one [N, N] attention slab per layer step, walked backwards
                pl.BlockSpec((None, None, N, N),
                             lambda bi, k: (bi, L - 1 - k, 0, 0)),
                # features: block index constant along k -> one DMA per batch
                pl.BlockSpec((None, N, D), lambda bi, k: (bi, 0, 0)),
            ],
            # output block index constant along k -> single writeback per batch
            out_specs=pl.BlockSpec((None, WP, D), lambda bi, k: (bi, 0, 0)),
            scratch_shapes=[pltpu.VMEM((WP, N), jnp.float32)],
        ),
        compiler_params=pltpu.CompilerParams(
            dimension_semantics=("parallel", "arbitrary")),
    )(att_all, feats)                               # [b, WP, D]

    # Row r holds part r's CAM feature; drop part 0 (and the padding rows).
    return out[:, 1:C, :]                           # [b, C-1, D]


def part_cam_reference(xs, features):
    """Pure-JAX transcription of the PyTorch forward (for verification)."""
    L = len(xs)
    att_tt = []
    for d in range(L):
        att_ts = []
        for e in range(C):
            att_tk = xs[d][:, e]                                   # [b, N]
            att_pt = xs[d][:, C:]                                  # [b, N-C, N]
            att_t1 = jnp.concatenate([att_tk[:, None, :], att_pt], axis=1)
            att_tk2 = att_t1[:, :, e]                              # [b, M]
            att_pt2 = att_t1[:, :, C:]                             # [b, M, N-C]
            att = jnp.concatenate([att_tk2[:, :, None], att_pt2], axis=2)
            att_ts.append(att)
        att_tt.append(att_ts)
    feat_cam = []
    for k in range(C):
        last = att_tt[0][k]
        for i in range(1, L):
            last = jnp.matmul(att_tt[i][k], last)
        row = last[:, 0, 1:][:, None, :]                           # [b, 1, N-C]
        fm = jax.nn.relu(features[:, C:])                          # [b, N-C, D]
        feat_cam.append(row @ fm)
    feat_cam = jnp.concatenate(feat_cam, axis=1)
    return feat_cam[:, 1:]


if __name__ == "__main__":
    key = jax.random.PRNGKey(0)
    b, L, P, D = 2, 3, 16, 128          # D multiple of 128 -> lane-dense output
    N = C + P                           # 21 tokens: 5 parts + 16 patches

    keys = jax.random.split(key, L + 1)
    xs = [jax.random.uniform(keys[d], (b, N, N), dtype=jnp.float32)
          for d in range(L)]
    features = jax.random.normal(keys[L], (b, N, D), dtype=jnp.float32)

    out = jax.block_until_ready(part_cam_pallas(xs, features))
    ref = jax.block_until_ready(part_cam_reference(xs, features))

    assert out.shape == (b, C - 1, D), out.shape
    assert jnp.allclose(out, ref, rtol=1e-4, atol=1e-4), (
        float(jnp.max(jnp.abs(out - ref))))
    print("KERNEL_OK")
</pallas_src>

<mosaic_0001>
module attributes {stable_mosaic.version = 11 : i64} {
  func.func @_part_cam_kernel(%arg0: i32, %arg1: i32, %arg2: memref<1x1x21x21xf32, #tpu.memory_space<vmem>>, %arg3: memref<1x21x128xf32, #tpu.memory_space<vmem>>, %arg4: memref<1x8x128xf32, #tpu.memory_space<vmem>>, %arg5: memref<8x21xf32, #tpu.memory_space<vmem>>) attributes {dimension_semantics = [#tpu.dimension_semantics<parallel>, #tpu.dimension_semantics<arbitrary>], iteration_bounds = array<i64: 2, 3>, scalar_prefetch = 0 : i64, scratch_operands = 1 : i64, tpu.core_type = #tpu.core_type<tc>, window_params = [{transform_indices = @transform_0, window_bounds = array<i64: 1, 1, 21, 21>}, {transform_indices = @transform_1, window_bounds = array<i64: 1, 21, 128>}, {transform_indices = @transform_2, window_bounds = array<i64: 1, 8, 128>}]} {
    %0 = tpu.iota {dimensions = array<i32: 1>} : vector<8x21xi32>
    %1 = tpu.iota {dimensions = array<i32: 0>} : vector<8x21xi32>
    %c5_i32 = arith.constant 5 : i32
    %2 = vector.broadcast %c5_i32 : i32 to vector<8x21xi32>
    %3 = arith.cmpi sge, %0, %2 : vector<8x21xi32>
    %4 = arith.cmpi eq, %0, %1 : vector<8x21xi32>
    %5 = arith.ori %3, %4 : vector<8x21xi1>
    %6 = arith.extui %5 : vector<8x21xi1> to vector<8x21xi32>
    %7 = arith.sitofp %6 : vector<8x21xi32> to vector<8x21xf32>
    %c0_i32 = arith.constant 0 : i32
    %8 = arith.cmpi eq, %arg1, %c0_i32 : i32
    %9 = arith.extui %8 : i1 to i32
    %c0_i32_0 = arith.constant 0 : i32
    %10 = arith.cmpi ne, %9, %c0_i32_0 : i32
    scf.if %10 {
      %c0 = arith.constant 0 : index
      %c0_4 = arith.constant 0 : index
      %c0_5 = arith.constant 0 : index
      %c0_6 = arith.constant 0 : index
      %17 = vector.load %arg2[%c0, %c0_4, %c0_5, %c0_6] : memref<1x1x21x21xf32, #tpu.memory_space<vmem>>, vector<1x1x8x21xf32>
      %18 = vector.shape_cast %17 : vector<1x1x8x21xf32> to vector<8x21xf32>
      %19 = arith.mulf %18, %7 : vector<8x21xf32>
      %c0_7 = arith.constant 0 : index
      %c0_8 = arith.constant 0 : index
      %20 = vector.load %arg5[%c0_7, %c0_8] : memref<8x21xf32, #tpu.memory_space<vmem>>, vector<8x21xf32>
      tpu.vector_store %arg5[%c0_7, %c0_8], %19 {strides = array<i32>} : memref<8x21xf32, #tpu.memory_space<vmem>>, vector<8x21xf32>,
    } else {
    }
    %c0_i32_1 = arith.constant 0 : i32
    %11 = arith.cmpi sgt, %arg1, %c0_i32_1 : i32
    %12 = arith.extui %11 : i1 to i32
    %c0_i32_2 = arith.constant 0 : i32
    %13 = arith.cmpi ne, %12, %c0_i32_2 : i32
    scf.if %13 {
      %c0 = arith.constant 0 : index
      %c0_4 = arith.constant 0 : index
      %c0_5 = arith.constant 0 : index
      %c0_6 = arith.constant 0 : index
      %17 = vector.load %arg2[%c0, %c0_4, %c0_5, %c0_6] : memref<1x1x21x21xf32, #tpu.memory_space<vmem>>, vector<1x1x21x21xf32>
      %18 = vector.shape_cast %17 : vector<1x1x21x21xf32> to vector<21x21xf32>
      %c0_7 = arith.constant 0 : index
      %c0_8 = arith.constant 0 : index
      %19 = vector.load %arg5[%c0_7, %c0_8] : memref<8x21xf32, #tpu.memory_space<vmem>>, vector<8x21xf32>
      %cst = arith.constant dense<0.000000e+00> : vector<8x21xf32>
      %20 = tpu.matmul %19, %18, %cst {dimension_numbers = #tpu.dot_dimension_numbers<[1], [0], [0], [1], [0, 0, 1, 1], [], []>} : vector<8x21xf32>, vector<21x21xf32>, vector<8x21xf32> -> vector<8x21xf32>
      %21 = arith.mulf %20, %7 : vector<8x21xf32>
      %c0_9 = arith.constant 0 : index
      %c0_10 = arith.constant 0 : index
      %22 = vector.load %arg5[%c0_9, %c0_10] : memref<8x21xf32, #tpu.memory_space<vmem>>, vector<8x21xf32>
      tpu.vector_store %arg5[%c0_9, %c0_10], %21 {strides = array<i32>} : memref<8x21xf32, #tpu.memory_space<vmem>>, vector<8x21xf32>,
    } else {
    }
    %c2_i32 = arith.constant 2 : i32
    %14 = arith.cmpi eq, %arg1, %c2_i32 : i32
    %15 = arith.extui %14 : i1 to i32
    %c0_i32_3 = arith.constant 0 : i32
    %16 = arith.cmpi ne, %15, %c0_i32_3 : i32
    scf.if %16 {
      %c0 = arith.constant 0 : index
      %c0_4 = arith.constant 0 : index
      %17 = vector.load %arg5[%c0, %c0_4] : memref<8x21xf32, #tpu.memory_space<vmem>>, vector<8x21xf32>
      %c5_i32_5 = arith.constant 5 : i32
      %18 = vector.broadcast %c5_i32_5 : i32 to vector<8x21xi32>
      %19 = arith.cmpi sge, %0, %18 : vector<8x21xi32>
      %20 = arith.extui %19 : vector<8x21xi1> to vector<8x21xi32>
      %21 = arith.sitofp %20 : vector<8x21xi32> to vector<8x21xf32>
      %22 = arith.mulf %17, %21 : vector<8x21xf32>
      %c0_6 = arith.constant 0 : index
      %c0_7 = arith.constant 0 : index
      %c0_8 = arith.constant 0 : index
      %23 = vector.load %arg3[%c0_6, %c0_7, %c0_8] : memref<1x21x128xf32, #tpu.memory_space<vmem>>, vector<1x21x128xf32>
      %24 = vector.shape_cast %23 : vector<1x21x128xf32> to vector<21x128xf32>
      %cst = arith.constant 0.000000e+00 : f32
      %25 = vector.broadcast %cst : f32 to vector<21x128xf32>
      %26 = arith.maximumf %24, %25 : vector<21x128xf32>
      %cst_9 = arith.constant dense<0.000000e+00> : vector<8x128xf32>
      %27 = tpu.matmul %22, %26, %cst_9 {dimension_numbers = #tpu.dot_dimension_numbers<[1], [0], [0], [1], [0, 0, 1, 1], [], []>} : vector<8x21xf32>, vector<21x128xf32>, vector<8x128xf32> -> vector<8x128xf32>
      %c0_10 = arith.constant 0 : index
      %c0_11 = arith.constant 0 : index
      %c0_12 = arith.constant 0 : index
      %28 = vector.load %arg4[%c0_10, %c0_11, %c0_12] : memref<1x8x128xf32, #tpu.memory_space<vmem>>, vector<1x8x128xf32>
      %29 = vector.shape_cast %28 : vector<1x8x128xf32> to vector<8x128xf32>
      %30 = vector.shape_cast %27 : vector<8x128xf32> to vector<1x8x128xf32>
      tpu.vector_store %arg4[%c0_10, %c0_11, %c0_12], %30 {strides = array<i32>} : memref<1x8x128xf32, #tpu.memory_space<vmem>>, vector<1x8x128xf32>,
    } else {
    }
    return
  }
  func.func @transform_0(%arg0: i32, %arg1: i32) -> (i32, i32, i32, i32) {
    %c2_i32 = arith.constant 2 : i32
    %0 = arith.subi %c2_i32, %arg1 : i32
    %c0_i32 = arith.constant 0 : i32
    %c0_i32_0 = arith.constant 0 : i32
    %c0_i32_1 = arith.constant 0 : i32
    return %arg0, %0, %c0_i32, %c0_i32_0 : i32, i32, i32, i32
  }
  func.func @transform_1(%arg0: i32, %arg1: i32) -> (i32, i32, i32) {
    %c0_i32 = arith.constant 0 : i32
    %c0_i32_0 = arith.constant 0 : i32
    %c0_i32_1 = arith.constant 0 : i32
    return %arg0, %c0_i32, %c0_i32_0 : i32, i32, i32
  }
  func.func @transform_2(%arg0: i32, %arg1: i32) -> (i32, i32, i32) {
    %c0_i32 = arith.constant 0 : i32
    %c0_i32_0 = arith.constant 0 : i32
    %c0_i32_1 = arith.constant 0 : i32
    return %arg0, %c0_i32, %c0_i32_0 : i32, i32, i32
  }
}

</mosaic_0001>

<llo_original>
// kernel: tpu_custom_call.1
$region0: #{tpu_custom_call.1}
  #allocation0 [shape = 'u32[]', space=smem, size = 0x4, offset = 0x4, fixed_abs, tag = 'smem constant byte address 0x4 - core index']
  #allocation1 [shape = 'u32[144,128]{1,0:T(1,128)}', space=vmem, size = 0x12000, scoped, tag = 'internal scratch']
  #allocation2 [shape = 'f32[8,21]{1,0:T(8,128)}', space=vmem, size = 0x1000, scoped, tag = 'scratch operand']
  %s0 = inlined_call_operand.vmem [shape: f32[2,3,21,21], index: 0, kind: input, shape index: {}]
  %s1 = inlined_call_operand.vmem [shape: f32[2,21,128], index: 1, kind: input, shape index: {}]
  %s2 = inlined_call_operand.hbm [shape: f32[2,8,128], index: 2, kind: output, shape index: {}]
  %s3 = sld [smem:[#allocation0]]
  $region53: #{tpu_custom_call.1} parent=0
    _
  %s5 = ssub.s32 1, %s3
  %s6 = scalar_select 0, %s5, %s3
  $region1: #{tpu_custom_call.1} parent=0
    #allocation3 [shape = 'u8[8192]{0}', space=vmem, size = 0x2000, scoped, tag = 'output window, operand 0']
    #allocation4 [shape = 's32[2]{0}', space=sflag, size = 0x8, scoped, tag = 'scoped memory for tpu_custom_call.1']
    %7 = vsyncpa [#allocation4], 0
    %s8 = scalar_lea.sflag [#allocation4], 1
    %9 = vsyncpa %s8, 0
    loop: start=0, step=1, limit=8
    $region2: #{tpu_custom_call.1} parent=1 // loop_pre_header
      _
    $region3: #{tpu_custom_call.1} parent=1 // loop_header
      %s11 = sphi 0, %s15
      %p12 = scmp.ge.s32.totalorder %s11, 8
      %s18 = sphi 0, %s30
      %s19 = sphi 0, %s26
      %s20 = sphi 0, %s18
      %s21 = sphi 0, %s19
      %s22 = sphi 0, %s20
      %s23 = sphi 0, %s21
      %s37 = sphi 0, %s39
      %s40 = sphi 0, %s37
      %s41 = sphi 0, %s40
      %s57 = sphi 0, %s41
      %s63 = sphi 0, %s65
      %s66 = sphi 0, %s63
      %s67 = sphi 0, %s66
      %s83 = sphi 0, %s67
      %s89 = sphi 0, %s91
      %s92 = sphi 0, %s89
      %s93 = sphi 0, %s92
      %s109 = sphi 0, %s93
    $region4: #{tpu_custom_call.1} parent=1 // loop_header_branch
      %14 = sbr.rel (%p12) target = $region8
    $region5: #{tpu_custom_call.1} parent=1 // loop_body
      %s16 = ssub.s32 %s11, 1
      %s17 = ssub.s32 %s11, 2
      %s24 = sadd.s32 1, %s19
      %p25 = scmp.ge.s32.totalorder %s24, 3
      %s26 = scalar_select %p25, 0, %s24
      %s27 = sadd.s32 1, %s18
      %s28 = scalar_select %p25, %s27, %s18
      %p29 = scmp.ge.s32.totalorder %s28, 2
      %s30 = scalar_select %p29, 0, %s28
      %s31 = ssub.s32 2, %s19
      %s32 = ssub.s32 2, %s26
      %s33 = ssub.s32 %s18, %s30
      %s34 = ssub.s32 %s31, %s32
      %s35 = sor.u32 %s33, %s34
      %p36 = scmp.eq.s32.totalorder %s35, 0
      %s38 = sadd.s32 %s37, 1
      %s39 = scalar_select %p36, %s37, %s38
      %p42 = pneg %p36
      %p43 = scmp.eq.s32.totalorder %s11, 5
      %p44 = por %p42, %p43
      %p45 = scmp.ne.s32.totalorder %s37, %s40
      %p46 = scmp.eq.s32.totalorder %s11, 0
      %p47 = por %p45, %p46
      %p48 = scmp.ne.s32.totalorder %s37, %s40
      %p49 = scmp.eq.s32.totalorder %s16, 5
      %p50 = por %p48, %p49
      %p51 = scmp.ne.s32.totalorder %s40, %s41
      %p52 = scmp.eq.s32.totalorder %s16, 0
      %p53 = por %p51, %p52
      %p54 = scmp.ne.s32.totalorder %s40, %s41
      %p55 = scmp.eq.s32.totalorder %s17, 5
      %p56 = por %p54, %p55
      %p58 = scmp.ne.s32.totalorder %s41, %s57
      %p59 = scmp.eq.s32.totalorder %s17, 0
      %p60 = por %p58, %p59
      %s61 = ssub.s32 %s18, %s30
      %p62 = scmp.eq.s32.totalorder %s61, 0
      %s64 = sadd.s32 %s63, 1
      %s65 = scalar_select %p62, %s63, %s64
      %p68 = pneg %p62
      %p69 = scmp.eq.s32.totalorder %s11, 5
      %p70 = por %p68, %p69
      %p71 = scmp.ne.s32.totalorder %s63, %s66
      %p72 = scmp.eq.s32.totalorder %s11, 0
      %p73 = por %p71, %p72
      %p74 = scmp.ne.s32.totalorder %s63, %s66
      %p75 = scmp.eq.s32.totalorder %s16, 5
      %p76 = por %p74, %p75
      %p77 = scmp.ne.s32.totalorder %s66, %s67
      %p78 = scmp.eq.s32.totalorder %s16, 0
      %p79 = por %p77, %p78
      %p80 = scmp.ne.s32.totalorder %s66, %s67
      %p81 = scmp.eq.s32.totalorder %s17, 5
      %p82 = por %p80, %p81
      %p84 = scmp.ne.s32.totalorder %s67, %s83
      %p85 = scmp.eq.s32.totalorder %s17, 0
      %p86 = por %p84, %p85
      %s87 = ssub.s32 %s18, %s30
      %p88 = scmp.eq.s32.totalorder %s87, 0
      %s90 = sadd.s32 %s89, 1
      %s91 = scalar_select %p88, %s89, %s90
      %p94 = pneg %p88
      %p95 = scmp.eq.s32.totalorder %s11, 5
      %p96 = por %p94, %p95
      %p97 = scmp.ne.s32.totalorder %s89, %s92
      %p98 = scmp.eq.s32.totalorder %s11, 0
      %p99 = por %p97, %p98
      %p100 = scmp.ne.s32.totalorder %s89, %s92
      %p101 = scmp.eq.s32.totalorder %s16, 5
      %p102 = por %p100, %p101
      %p103 = scmp.ne.s32.totalorder %s92, %s93
      %p104 = scmp.eq.s32.totalorder %s16, 0
      %p105 = por %p103, %p104
      %p106 = scmp.ne.s32.totalorder %s92, %s93
      %p107 = scmp.eq.s32.totalorder %s17, 5
      %p108 = por %p106, %p107
      %p110 = scmp.ne.s32.totalorder %s93, %s109
      %p111 = scmp.eq.s32.totalorder %s17, 0
      %p112 = por %p110, %p111
      %p113 = scmp.le.s32.totalorder 1, %s11
      %p114 = scmp.lt.s32.totalorder %s11, 7
      %p115 = pnand %p113, %p114
      %p116 = pneg %p115
      // Predicated region
      $region9: #{tpu_custom_call.1} parent=5 // pred_check
        _
      $region10: #{tpu_custom_call.1} parent=5 // pred_check_branch
        %118 = sbr.rel (%p115) target = $region12
      $region11: #{tpu_custom_call.1} parent=5 // pred_region
        %s119 = ssub.s32 %s11, 1
      $region12: #{tpu_custom_call.1} parent=5 // pred_fallthru
        _
      %p120 = scmp.lt.s32.totalorder %s11, 6
      // Predicated region
      $region13: #{tpu_custom_call.1} parent=5 // pred_check
        %p121 = pneg %p120
      $region14: #{tpu_custom_call.1} parent=5 // pred_check_branch
        %123 = sbr.rel (%p121) target = $region16
      $region15: #{tpu_custom_call.1} parent=5 // pred_region
        // Predicated region
        $region17: #{tpu_custom_call.1} parent=15 // pred_check
          %p124 = pneg %p47
        $region18: #{tpu_custom_call.1} parent=15 // pred_check_branch
          %126 = sbr.rel (%p124) target = $region20
        $region19: #{tpu_custom_call.1} parent=15 // pred_region
          %s127 = ssub.s32 2, %s19
          %p128 = scmp.lt.s32.totalorder %s18, 1
          %s129 = scalar_select %p128, %s18, 1
          %p130 = scmp.lt.s32.totalorder %s127, 2
          %s131 = scalar_select %p130, %s127, 2
          %s132 = smul.addr %s131, 3
          %s133 = smul.addr %s129, 9
          %s134 = sadd.s32 %s132, %s133
          %s135 = smul.addr %s134, 8
          %s136 = scalar_lea.vmem %s0, %s135
          %s137 = ssub.s32 2, %s19
        $region20: #{tpu_custom_call.1} parent=15 // pred_fallthru
          _
        // Predicated region
        $region21: #{tpu_custom_call.1} parent=15 // pred_check
          %p138 = pneg %p73
        $region22: #{tpu_custom_call.1} parent=15 // pred_check_branch
          %140 = sbr.rel (%p138) target = $region24
        $region23: #{tpu_custom_call.1} parent=15 // pred_region
          %p141 = scmp.lt.s32.totalorder %s18, 1
          %s142 = scalar_select %p141, %s18, 1
          %s143 = smul.addr %s142, 3
          %s144 = smul.addr %s143, 8
          %s145 = scalar_lea.vmem %s1, %s144
        $region24: #{tpu_custom_call.1} parent=15 // pred_fallthru
          _
      $region16: #{tpu_custom_call.1} parent=5 // pred_fallthru
        _
      %p146 = scmp.le.s32.totalorder 1, %s11
      %p147 = scmp.lt.s32.totalorder %s11, 7
      %p148 = pnand %p146, %p147
      %p149 = pneg %p148
      // Predicated region
      $region25: #{tpu_custom_call.1} parent=5 // pred_check
        _
      $region26: #{tpu_custom_call.1} parent=5 // pred_check_branch
        %151 = sbr.rel (%p148) target = $region28
      $region27: #{tpu_custom_call.1} parent=5 // pred_region
        %s152 = ssub.s32 %s11, 1
        %s153 = ssub.s32 2, %s21
        %p154 = scmp.lt.s32.totalorder %s20, 1
        %s155 = scalar_select %p154, %s20, 1
        %p156 = scmp.lt.s32.totalorder %s153, 2
        %s157 = scalar_select %p156, %s153, 2
        %s158 = smul.addr %s157, 3
        %s159 = smul.addr %s155, 9
        %s160 = sadd.s32 %s158, %s159
        %s161 = smul.addr %s160, 8
        %s162 = scalar_lea.vmem %s0, %s161
        %p163 = pneg %p53
        %p164 = pneg %p50
        %p165 = scmp.lt.s32.totalorder %s20, 1
        %s166 = scalar_select %p165, %s20, 1
        %s167 = smul.addr %s166, 3
        %s168 = smul.addr %s167, 8
        %s169 = scalar_lea.vmem %s1, %s168
        %p170 = pneg %p79
        %p171 = pneg %p76
        %p172 = pneg %p105
        %p173 = pneg %p102
        %s174 = sand.u32 %s92, 1
        %s175 = scalar_lea.sflag [#allocation4], %s174
        %s176 = sand.u32 %s92, 1
        %s177 = smul.addr %s176, 8
        %s178 = scalar_lea.vmem [#allocation3], %s177
        %s179 = ssub.s32 2, %s21
        %p180 = scmp.lt.s32.totalorder %s20, 1
        %s181 = scalar_select %p180, %s20, 1
        %p182 = scmp.lt.s32.totalorder %s179, 2
        %s183 = scalar_select %p182, %s179, 2
        %s184 = smul.addr %s183, 3
        %s185 = smul.addr %s181, 9
        %s186 = sadd.s32 %s184, %s185
        %s187 = smul.addr %s186, 8
        %s188 = scalar_lea.vmem %s0, %s187
        %s189 = ssub.s32 2, %s21
        %p190 = scmp.lt.s32.totalorder %s20, 1
        %s191 = scalar_select %p190, %s20, 1
        %s192 = smul.addr %s191, 3
        %s193 = smul.addr %s192, 8
        %s194 = scalar_lea.vmem %s1, %s193
        %v195 = vlaneseq
        %v196 = vand.u32 %v195, 127
        %v197 = vlaneseq
        %v198 = vshrl.u32 %v197, 7
        %vm199 = vcmp.ge.s32.totalorder %v196, 5
        %vm200 = vcmp.eq.s32.totalorder %v196, %v198
        %vm201 = vmor %vm199, %vm200
        %v202 = vsel %vm201, 1, 0
        %v203 = vcvt.s32.f32 %v202
        %p204 = scmp.eq.s32.totalorder %s21, 0
        // Predicated region
        $region29: #{tpu_custom_call.1} parent=27 // pred_check
          %p205 = pneg %p204
        $region30: #{tpu_custom_call.1} parent=27 // pred_check_branch
          %207 = sbr.rel (%p205) target = $region32
        $region31: #{tpu_custom_call.1} parent=27 // pred_region
          %v208 = vld [vmem:[%s188] sm:$0xff]
          %v209 = vmul.f32 %v208, %v203
          %vm210 = vcmask 171008
          %211 = vst.msk [vmem:[#allocation2] sm:$0xff] %vm210, %v209
        $region32: #{tpu_custom_call.1} parent=27 // pred_fallthru
          _
        %p212 = scmp.gt.s32.totalorder %s21, 0
        // Predicated region
        $region33: #{tpu_custom_call.1} parent=27 // pred_check
          %p213 = pneg %p212
        $region34: #{tpu_custom_call.1} parent=27 // pred_check_branch
          %215 = sbr.rel (%p213) target = $region36
        $region35: #{tpu_custom_call.1} parent=27 // pred_region
          %v216 = vld [vmem:[%s188] sm:$0xff]
          %v217 = vld [vmem:[%s188 + $0x8] sm:$0xff]
          %v218 = vld [vmem:[%s188 + $0x10] sm:$0x1f]
          %v219 = vld [vmem:[#allocation2] sm:$0xff]
          %vm220 = vcmask 171008
          %v222 = vsel %vm220, %v219, 0
          %vm224 = vcmask 1044480
          %v226 = vsel %vm224, %v218, 0
          %228 = vmatprep.subr.mxu0 0.0
          %229 = vmatpush1.msra.mxu0 %v216
          %230 = vmatprep.subr.mxu0 0.0
          %231 = vmatpush1.msra.mxu0 %v217
          %232 = vmatprep.subr.mxu0 0.0
          %233 = vmatpush1.msra.mxu0 %v226
          %234 = vmatprep.subr.mxu0 0.0
          %235 = vmatpush1.msra.mxu0 0.0
          %236 = vmatprep.subr.mxu0 0.0
          %237 = vmatpush1.msra.mxu0 0.0
          %238 = vmatprep.subr.mxu0 0.0
          %239 = vmatpush1.msra.mxu0 0.0
          %240 = vmatprep.subr.mxu0 0.0
          %241 = vmatpush1.msra.mxu0 0.0
          %242 = vmatprep.subr.mxu0 0.0
          %243 = vmatpush1.msra.mxu0 0.0
          %244 = vmatprep.subr.mxu0 0.0
          %245 = vmatpush1.msra.mxu0 0.0
          %246 = vmatprep.subr.mxu0 0.0
          %247 = vmatpush1.msra.mxu0 0.0
          %248 = vmatprep.subr.mxu0 0.0
          %249 = vmatpush1.msra.mxu0 0.0
          %250 = vmatprep.subr.mxu0 0.0
          %251 = vmatpush1.msra.mxu0 0.0
          %252 = vmatprep.subr.mxu0 0.0
          %253 = vmatpush1.msra.mxu0 0.0
          %254 = vmatprep.subr.mxu0 0.0
          %255 = vmatpush1.msra.mxu0 0.0
          %256 = vmatprep.subr.mxu0 0.0
          %257 = vmatpush1.msra.mxu0 0.0
          %258 = vmatprep.subr.mxu0 0.0
          %259 = vmatpush1.msra.mxu0 0.0
          %260 = vmatprep.subr.mxu0 0.0
          %261 = vmatpush1.msra.mxu0 0.0
          %262 = vmatprep.subr.mxu0 0.0
          %263 = vmatpush1.msra.mxu0 0.0
          %264 = vmatprep.subr.mxu0 0.0
          %265 = vmatpush1.msra.mxu0 0.0
          %266 = vmatprep.subr.mxu0 0.0
          %267 = vmatpush1.msra.mxu0 0.0
          %268 = vmatprep.subr.mxu0 0.0
          %269 = vmatpush1.msra.mxu0 0.0
          %270 = vmatprep.subr.mxu0 0.0
          %271 = vmatpush1.msra.mxu0 0.0
          %272 = vmatprep.subr.mxu0 0.0
          %273 = vmatpush1.msra.mxu0 0.0
          %274 = vmatprep.subr.mxu0 0.0
          %275 = vmatpush1.msra.mxu0 0.0
          %276 = vmatprep.subr.mxu0 0.0
          %277 = vmatpush1.msra.mxu0 0.0
          %278 = vmatprep.subr.mxu0 0.0
          %279 = vmatpush1.msra.mxu0 0.0
          %280 = vmatprep.subr.mxu0 0.0
          %281 = vmatpush1.msra.mxu0 0.0
          %282 = vmatprep.subr.mxu0 0.0
          %283 = vmatpush1.msra.mxu0 0.0
          %284 = vmatprep.subr.mxu0 0.0
          %285 = vmatpush1.msra.mxu0 0.0
          %286 = vmatprep.subr.mxu0 0.0
          %287 = vmatpush1.msra.mxu0 0.0
          %288 = vmatprep.subr.mxu0 0.0
          %289 = vmatpush1.msra.mxu0 0.0
          %290 = vmatprep.subr.mxu0 0.0
          %291 = vmatpush1.msra.mxu0 0.0
          %292 = vmatprep.mubr.f32.mxu0 0.0
          %293 = vmatmul.mubr.f32.gmra.mrb[0].mxu0 %v222
          %v294 = vpop.f32.mrb[0].mxu0
          %v295 = vadd.f32 0.0, %v294
          %v296 = vpop.f32.mrb[0].mxu0
          %297 = vdwg.mxu0
          %v298 = vmul.f32 %v295, %v203
          %299 = vst.msk [vmem:[#allocation2] sm:$0xff] %vm220, %v298
        $region36: #{tpu_custom_call.1} parent=27 // pred_fallthru
          _
        %p300 = scmp.eq.s32.totalorder %s21, 2
        // Predicated region
        $region37: #{tpu_custom_call.1} parent=27 // pred_check
          %p301 = pneg %p300
        $region38: #{tpu_custom_call.1} parent=27 // pred_check_branch
          %303 = sbr.rel (%p301) target = $region40
        $region39: #{tpu_custom_call.1} parent=27 // pred_region
          %v304 = vld [vmem:[#allocation2] sm:$0xff]
          %v305 = vsel %vm199, 1, 0
          %v306 = vcvt.s32.f32 %v305
          %v307 = vmul.f32 %v304, %v306
          %v308 = vld [vmem:[%s194] sm:$0xff]
          %v309 = vld [vmem:[%s194 + $0x8] sm:$0xff]
          %v310 = vld [vmem:[%s194 + $0x10] sm:$0x1f]
          %v311 = vmax.f32 %v308, 0.0
          %v312 = vmax.f32 %v309, 0.0
          %v313 = vmax.f32 %v310, 0.0
          %vm314 = vcmask 171008
          %v316 = vsel %vm314, %v307, 0
          %vm318 = vcmask 1044480
          %v320 = vsel %vm318, %v313, 0
          %322 = vmatprep.subr.mxu0 0.0
          %323 = vmatpush1.msra.mxu0 %v311
          %324 = vmatprep.subr.mxu0 0.0
          %325 = vmatpush1.msra.mxu0 %v312
          %326 = vmatprep.subr.mxu0 0.0
          %327 = vmatpush1.msra.mxu0 %v320
          %328 = vmatprep.subr.mxu0 0.0
          %329 = vmatpush1.msra.mxu0 0.0
          %330 = vmatprep.subr.mxu0 0.0
          %331 = vmatpush1.msra.mxu0 0.0
          %332 = vmatprep.subr.mxu0 0.0
          %333 = vmatpush1.msra.mxu0 0.0
          %334 = vmatprep.subr.mxu0 0.0
          %335 = vmatpush1.msra.mxu0 0.0
          %336 = vmatprep.subr.mxu0 0.0
          %337 = vmatpush1.msra.mxu0 0.0
          %338 = vmatprep.subr.mxu0 0.0
          %339 = vmatpush1.msra.mxu0 0.0
          %340 = vmatprep.subr.mxu0 0.0
          %341 = vmatpush1.msra.mxu0 0.0
          %342 = vmatprep.subr.mxu0 0.0
          %343 = vmatpush1.msra.mxu0 0.0
          %344 = vmatprep.subr.mxu0 0.0
          %345 = vmatpush1.msra.mxu0 0.0
          %346 = vmatprep.subr.mxu0 0.0
          %347 = vmatpush1.msra.mxu0 0.0
          %348 = vmatprep.subr.mxu0 0.0
          %349 = vmatpush1.msra.mxu0 0.0
          %350 = vmatprep.subr.mxu0 0.0
          %351 = vmatpush1.msra.mxu0 0.0
          %352 = vmatprep.subr.mxu0 0.0
          %353 = vmatpush1.msra.mxu0 0.0
          %354 = vmatprep.subr.mxu0 0.0
          %355 = vmatpush1.msra.mxu0 0.0
          %356 = vmatprep.subr.mxu0 0.0
          %357 = vmatpush1.msra.mxu0 0.0
          %358 = vmatprep.subr.mxu0 0.0
          %359 = vmatpush1.msra.mxu0 0.0
          %360 = vmatprep.subr.mxu0 0.0
          %361 = vmatpush1.msra.mxu0 0.0
          %362 = vmatprep.subr.mxu0 0.0
          %363 = vmatpush1.msra.mxu0 0.0
          %364 = vmatprep.subr.mxu0 0.0
          %365 = vmatpush1.msra.mxu0 0.0
          %366 = vmatprep.subr.mxu0 0.0
          %367 = vmatpush1.msra.mxu0 0.0
          %368 = vmatprep.subr.mxu0 0.0
          %369 = vmatpush1.msra.mxu0 0.0
          %370 = vmatprep.subr.mxu0 0.0
          %371 = vmatpush1.msra.mxu0 0.0
          %372 = vmatprep.subr.mxu0 0.0
          %373 = vmatpush1.msra.mxu0 0.0
          %374 = vmatprep.subr.mxu0 0.0
          %375 = vmatpush1.msra.mxu0 0.0
          %376 = vmatprep.subr.mxu0 0.0
          %377 = vmatpush1.msra.mxu0 0.0
          %378 = vmatprep.subr.mxu0 0.0
          %379 = vmatpush1.msra.mxu0 0.0
          %380 = vmatprep.subr.mxu0 0.0
          %381 = vmatpush1.msra.mxu0 0.0
          %382 = vmatprep.subr.mxu0 0.0
          %383 = vmatpush1.msra.mxu0 0.0
          %384 = vmatprep.subr.mxu0 0.0
          %385 = vmatpush1.msra.mxu0 0.0
          %386 = vmatprep.mubr.f32.mxu0 0.0
          %387 = vmatmul.mubr.f32.gmra.mrb[0].mxu0 %v316
          %v388 = vpop.f32.mrb[0].mxu0
          %v389 = vadd.f32 0.0, %v388
          %v390 = vpop.f32.mrb[0].mxu0
          %391 = vdwg.mxu0
          %392 = vst [vmem:[%s178] sm:$0xff] %v389
        $region40: #{tpu_custom_call.1} parent=27 // pred_fallthru
          _
        %s393 = sand.u32 %s92, 1
        %s394 = scalar_lea.sflag [#allocation4], %s393
        %s395 = sand.u32 %s92, 1
        %s396 = smul.addr %s395, 8
        %s397 = scalar_lea.vmem [#allocation3], %s396
        // Predicated region
        $region41: #{tpu_custom_call.1} parent=27 // pred_check
          %p398 = pneg %p102
        $region42: #{tpu_custom_call.1} parent=27 // pred_check_branch
          %400 = sbr.rel (%p398) target = $region44
        $region43: #{tpu_custom_call.1} parent=27 // pred_region
          %s402 = ssub.s32 128, 128
          %403 = vsyncadd %s394, %s402
          %s404 = smul.addr %s20, 128
          %s405 = scalar_lea.hbm %s2, %s404
          %s407 = sshll.u32 %s397, 4
          %s408 = int_to_ptr.vmem [resolvable:$true] %s407
          %410 = dma.vmem_to_hbm [thread:$0]  %s408, 128, %s405, %s394
        $region44: #{tpu_custom_call.1} parent=27 // pred_fallthru
          _
      $region28: #{tpu_custom_call.1} parent=5 // pred_fallthru
        _
      %p411 = scmp.le.s32.totalorder 2, %s11
      // Predicated region
      $region45: #{tpu_custom_call.1} parent=5 // pred_check
        %p412 = pneg %p411
      $region46: #{tpu_custom_call.1} parent=5 // pred_check_branch
        %414 = sbr.rel (%p412) target = $region48
      $region47: #{tpu_custom_call.1} parent=5 // pred_region
        %s415 = ssub.s32 %s11, 2
        // Predicated region
        $region49: #{tpu_custom_call.1} parent=47 // pred_check
          %p416 = pneg %p108
        $region50: #{tpu_custom_call.1} parent=47 // pred_check_branch
          %418 = sbr.rel (%p416) target = $region52
        $region51: #{tpu_custom_call.1} parent=47 // pred_region
          %s419 = sand.u32 %s93, 1
          %s420 = scalar_lea.sflag [#allocation4], %s419
          %s421 = sand.u32 %s93, 1
          %s422 = smul.addr %s421, 8
          %s423 = scalar_lea.vmem [#allocation3], %s422
          %424 = dma.done %s420, 128
        $region52: #{tpu_custom_call.1} parent=47 // pred_fallthru
          _
      $region48: #{tpu_custom_call.1} parent=5 // pred_fallthru
        _
    $region6: #{tpu_custom_call.1} parent=1 // loop_footer
      %s15 = sadd.s32 1, %s11
    $region7: #{tpu_custom_call.1} parent=1 // loop_footer_branch
      %10 = sbr.rel target = $region3
    $region8: #{tpu_custom_call.1} parent=1 // loop_exit
      _
    %425 = vsyncpa [#allocation4], 1
    %s426 = scalar_lea.sflag [#allocation4], 1
    %427 = vsyncpa %s426, 1

</llo_original>
